<compile_context>
chip_gen: v6e
topology: v6e:2x2x1
jax: 0.10.0
libtpu: 0.0.40
codegen_flags: <defaults>
</compile_context>

<pallas_src>
import jax
import jax.numpy as jnp
from jax.experimental import pallas as pl
from jax.experimental.pallas import tpu as pltpu


TB_MAX = 4096  # batch tile (columns); comfortably fits v7x's 64 MiB VMEM too.


def _round_up(n, m):
    return ((n + m - 1) // m) * m


def airwrite_kernel(x_ref, w1_ref, b1_ref, w2_ref, b2_ref, w3_ref, b3_ref, o_ref):
    # x_ref: (9, TB), weights (out, in), biases (out, 1), o_ref: (1, TB)
    x = x_ref[...]
    # fc1 + relu
    h1 = jnp.dot(w1_ref[...], x, preferred_element_type=jnp.float32)   # (64, TB)
    h1 = jnp.maximum(h1 + b1_ref[...], 0.0)
    # fc2 + relu
    h2 = jnp.dot(w2_ref[...], h1, preferred_element_type=jnp.float32)  # (64, TB)
    h2 = jnp.maximum(h2 + b2_ref[...], 0.0)
    # fc3 + sigmoid (lane-dense (1, TB) store)
    logits = jnp.dot(w3_ref[...], h2, preferred_element_type=jnp.float32) + b3_ref[...]
    o_ref[...] = jax.nn.sigmoid(logits)


def airwrite_forward(x, params):
    """x: (B, 9) float32 -> (B, 1) float32, matching AirWrite.forward."""
    w1, b1, w2, b2, w3, b3 = params
    B = x.shape[0]

    # Pick batch tile: pad B to a lane-multiple, cap tile at TB_MAX.
    TB = min(TB_MAX, _round_up(max(B, 1), 128))
    Bp = _round_up(B, TB)

    # Feature-major, lane-dense input slab: (9, Bp).
    x_fm = jnp.pad(x, ((0, Bp - B), (0, 0))).T

    grid = (Bp // TB,)

    cost = pl.CostEstimate(
        flops=2 * Bp * (9 * 64 + 64 * 64 + 64 * 1),
        transcendentals=Bp,
        bytes_accessed=4 * (9 * Bp + Bp)
        + 4 * (64 * 9 + 64 + 64 * 64 + 64 + 64 + 1),
    )

    const = lambda shape: pl.BlockSpec(shape, lambda i: (0, 0))

    out = pl.pallas_call(
        airwrite_kernel,
        out_shape=jax.ShapeDtypeStruct((1, Bp), jnp.float32),
        grid=grid,
        in_specs=[
            pl.BlockSpec((9, TB), lambda i: (0, i)),   # x tile, pipelined over batch
            const(w1.shape), const(b1.shape),          # weights/biases: resident
            const(w2.shape), const(b2.shape),
            const(w3.shape), const(b3.shape),
        ],
        out_specs=pl.BlockSpec((1, TB), lambda i: (0, i)),
        compiler_params=pltpu.CompilerParams(
            dimension_semantics=("parallel",),
            vmem_limit_bytes=32 * 1024 * 1024,
        ),
        cost_estimate=cost,
    )(x_fm, w1, b1, w2, b2, w3, b3)

    # Back to (B, 1) row-major.
    return out[:, :B].T


def init_params(key):
    """Deterministic init mimicking nn.Linear's U(-1/sqrt(fan_in), 1/sqrt(fan_in)).

    Weights stored as (out, in); biases as (out, 1) for the feature-major kernel.
    """
    ks = jax.random.split(key, 6)

    def linear(kw, kb, fan_in, fan_out):
        bound = 1.0 / jnp.sqrt(jnp.float32(fan_in))
        w = jax.random.uniform(kw, (fan_out, fan_in), jnp.float32, -bound, bound)
        b = jax.random.uniform(kb, (fan_out, 1), jnp.float32, -bound, bound)
        return w, b

    w1, b1 = linear(ks[0], ks[1], 9, 64)
    w2, b2 = linear(ks[2], ks[3], 64, 64)
    w3, b3 = linear(ks[4], ks[5], 64, 1)
    return (w1, b1, w2, b2, w3, b3)


def reference_forward(x, params):
    w1, b1, w2, b2, w3, b3 = params
    h = jnp.maximum(x @ w1.T + b1.T, 0.0)
    h = jnp.maximum(h @ w2.T + b2.T, 0.0)
    return jax.nn.sigmoid(h @ w3.T + b3.T)


if __name__ == "__main__":
    key = jax.random.PRNGKey(0)
    kx, kp = jax.random.split(key)

    B = 8
    x = jax.random.normal(kx, (B, 9), jnp.float32)
    params = init_params(kp)

    out = airwrite_forward(x, params)
    out = jax.block_until_ready(out)

    ref = reference_forward(x, params)
    assert out.shape == (B, 1), out.shape
    assert jnp.allclose(out, ref, atol=1e-5, rtol=1e-5), float(jnp.max(jnp.abs(out - ref)))

    print("KERNEL_OK")
</pallas_src>

<mosaic_0001>
module attributes {stable_mosaic.version = 11 : i64} {
  func.func @airwrite_kernel(%arg0: i32, %arg1: memref<9x128xf32, #tpu.memory_space<vmem>>, %arg2: memref<64x9xf32, #tpu.memory_space<vmem>>, %arg3: memref<64x1xf32, #tpu.memory_space<vmem>>, %arg4: memref<64x64xf32, #tpu.memory_space<vmem>>, %arg5: memref<64x1xf32, #tpu.memory_space<vmem>>, %arg6: memref<1x64xf32, #tpu.memory_space<vmem>>, %arg7: memref<1x1xf32, #tpu.memory_space<vmem>>, %arg8: memref<1x128xf32, #tpu.memory_space<vmem>>) attributes {dimension_semantics = [#tpu.dimension_semantics<parallel>], iteration_bounds = array<i64: 1>, scalar_prefetch = 0 : i64, scratch_operands = 0 : i64, tpu.core_type = #tpu.core_type<tc>, window_params = [{transform_indices = @transform_0, window_bounds = array<i64: 9, 128>}, {pipeline_mode = #tpu.pipeline_mode<synchronous>, transform_indices = @transform_1, window_bounds = array<i64: 64, 9>}, {pipeline_mode = #tpu.pipeline_mode<synchronous>, transform_indices = @transform_2, window_bounds = array<i64: 64, 1>}, {pipeline_mode = #tpu.pipeline_mode<synchronous>, transform_indices = @transform_3, window_bounds = array<i64: 64, 64>}, {pipeline_mode = #tpu.pipeline_mode<synchronous>, transform_indices = @transform_4, window_bounds = array<i64: 64, 1>}, {pipeline_mode = #tpu.pipeline_mode<synchronous>, transform_indices = @transform_5, window_bounds = array<i64: 1, 64>}, {pipeline_mode = #tpu.pipeline_mode<synchronous>, transform_indices = @transform_6, window_bounds = array<i64: 1, 1>}, {transform_indices = @transform_7, window_bounds = array<i64: 1, 128>}]} {
    %c0 = arith.constant 0 : index
    %c0_0 = arith.constant 0 : index
    %0 = vector.load %arg1[%c0, %c0_0] : memref<9x128xf32, #tpu.memory_space<vmem>>, vector<9x128xf32>
    %c0_1 = arith.constant 0 : index
    %c0_2 = arith.constant 0 : index
    %1 = vector.load %arg2[%c0_1, %c0_2] : memref<64x9xf32, #tpu.memory_space<vmem>>, vector<64x9xf32>
    %cst = arith.constant dense<0.000000e+00> : vector<64x128xf32>
    %2 = tpu.matmul %1, %0, %cst {dimension_numbers = #tpu.dot_dimension_numbers<[1], [0], [0], [1], [0, 0, 1, 1], [], []>} : vector<64x9xf32>, vector<9x128xf32>, vector<64x128xf32> -> vector<64x128xf32>
    %c0_3 = arith.constant 0 : index
    %c0_4 = arith.constant 0 : index
    %3 = vector.load %arg3[%c0_3, %c0_4] : memref<64x1xf32, #tpu.memory_space<vmem>>, vector<64x1xf32>
    %4 = vector.broadcast %3 : vector<64x1xf32> to vector<64x128xf32>
    %5 = arith.addf %2, %4 : vector<64x128xf32>
    %cst_5 = arith.constant 0.000000e+00 : f32
    %6 = vector.broadcast %cst_5 : f32 to vector<64x128xf32>
    %7 = arith.maximumf %5, %6 : vector<64x128xf32>
    %c0_6 = arith.constant 0 : index
    %c0_7 = arith.constant 0 : index
    %8 = vector.load %arg4[%c0_6, %c0_7] : memref<64x64xf32, #tpu.memory_space<vmem>>, vector<64x64xf32>
    %cst_8 = arith.constant dense<0.000000e+00> : vector<64x128xf32>
    %9 = tpu.matmul %8, %7, %cst_8 {dimension_numbers = #tpu.dot_dimension_numbers<[1], [0], [0], [1], [0, 0, 1, 1], [], []>} : vector<64x64xf32>, vector<64x128xf32>, vector<64x128xf32> -> vector<64x128xf32>
    %c0_9 = arith.constant 0 : index
    %c0_10 = arith.constant 0 : index
    %10 = vector.load %arg5[%c0_9, %c0_10] : memref<64x1xf32, #tpu.memory_space<vmem>>, vector<64x1xf32>
    %11 = vector.broadcast %10 : vector<64x1xf32> to vector<64x128xf32>
    %12 = arith.addf %9, %11 : vector<64x128xf32>
    %cst_11 = arith.constant 0.000000e+00 : f32
    %13 = vector.broadcast %cst_11 : f32 to vector<64x128xf32>
    %14 = arith.maximumf %12, %13 : vector<64x128xf32>
    %c0_12 = arith.constant 0 : index
    %c0_13 = arith.constant 0 : index
    %15 = vector.load %arg6[%c0_12, %c0_13] : memref<1x64xf32, #tpu.memory_space<vmem>>, vector<1x64xf32>
    %cst_14 = arith.constant dense<0.000000e+00> : vector<1x128xf32>
    %16 = tpu.matmul %15, %14, %cst_14 {dimension_numbers = #tpu.dot_dimension_numbers<[1], [0], [0], [1], [0, 0, 1, 1], [], []>} : vector<1x64xf32>, vector<64x128xf32>, vector<1x128xf32> -> vector<1x128xf32>
    %c0_15 = arith.constant 0 : index
    %c0_16 = arith.constant 0 : index
    %17 = vector.load %arg7[%c0_15, %c0_16] : memref<1x1xf32, #tpu.memory_space<vmem>>, vector<1x1xf32>
    %18 = vector.broadcast %17 : vector<1x1xf32> to vector<1x128xf32>
    %19 = arith.addf %16, %18 : vector<1x128xf32>
    %20 = arith.negf %19 : vector<1x128xf32>
    %21 = math.exp %20 : vector<1x128xf32>
    %cst_17 = arith.constant 1.000000e+00 : f32
    %22 = vector.broadcast %cst_17 : f32 to vector<1x128xf32>
    %23 = arith.addf %22, %21 : vector<1x128xf32>
    %24 = arith.divf %22, %23 : vector<1x128xf32>
    %c0_18 = arith.constant 0 : index
    %c0_19 = arith.constant 0 : index
    %25 = vector.load %arg8[%c0_18, %c0_19] : memref<1x128xf32, #tpu.memory_space<vmem>>, vector<1x128xf32>
    tpu.vector_store %arg8[%c0_18, %c0_19], %24 {strides = array<i32>} : memref<1x128xf32, #tpu.memory_space<vmem>>, vector<1x128xf32>,
    return
  }
  func.func @transform_0(%arg0: i32) -> (i32, i32) {
    %c0_i32 = arith.constant 0 : i32
    %c0_i32_0 = arith.constant 0 : i32
    return %c0_i32, %arg0 : i32, i32
  }
  func.func @transform_1(%arg0: i32) -> (i32, i32) {
    %c0_i32 = arith.constant 0 : i32
    %c0_i32_0 = arith.constant 0 : i32
    %c0_i32_1 = arith.constant 0 : i32
    return %c0_i32, %c0_i32_0 : i32, i32
  }
  func.func @transform_2(%arg0: i32) -> (i32, i32) {
    %c0_i32 = arith.constant 0 : i32
    %c0_i32_0 = arith.constant 0 : i32
    %c0_i32_1 = arith.constant 0 : i32
    return %c0_i32, %c0_i32_0 : i32, i32
  }
  func.func @transform_3(%arg0: i32) -> (i32, i32) {
    %c0_i32 = arith.constant 0 : i32
    %c0_i32_0 = arith.constant 0 : i32
    %c0_i32_1 = arith.constant 0 : i32
    return %c0_i32, %c0_i32_0 : i32, i32
  }
  func.func @transform_4(%arg0: i32) -> (i32, i32) {
    %c0_i32 = arith.constant 0 : i32
    %c0_i32_0 = arith.constant 0 : i32
    %c0_i32_1 = arith.constant 0 : i32
    return %c0_i32, %c0_i32_0 : i32, i32
  }
  func.func @transform_5(%arg0: i32) -> (i32, i32) {
    %c0_i32 = arith.constant 0 : i32
    %c0_i32_0 = arith.constant 0 : i32
    %c0_i32_1 = arith.constant 0 : i32
    return %c0_i32, %c0_i32_0 : i32, i32
  }
  func.func @transform_6(%arg0: i32) -> (i32, i32) {
    %c0_i32 = arith.constant 0 : i32
    %c0_i32_0 = arith.constant 0 : i32
    %c0_i32_1 = arith.constant 0 : i32
    return %c0_i32, %c0_i32_0 : i32, i32
  }
  func.func @transform_7(%arg0: i32) -> (i32, i32) {
    %c0_i32 = arith.constant 0 : i32
    %c0_i32_0 = arith.constant 0 : i32
    return %c0_i32, %arg0 : i32, i32
  }
}

</mosaic_0001>

<llo_original>
// kernel: tpu_custom_call.1
$region0: #{tpu_custom_call.1}
  #allocation0 [shape = 'u32[]', space=smem, size = 0x4, offset = 0x4, fixed_abs, tag = 'smem constant byte address 0x4 - core index']
  #allocation1 [shape = 'u32[144,128]{1,0:T(1,128)}', space=vmem, size = 0x12000, scoped, tag = 'internal scratch']
  #allocation2 [shape = 'f32[1,1]{1,0:T(1,128)S(1)}', space=vmem, size = 0x200, scoped, tag = 'scoped memory for tpu_custom_call.1']
  %s0 = inlined_call_operand.vmem [shape: f32[9,128], index: 0, kind: input, shape index: {}]
  %s1 = inlined_call_operand.vmem [shape: f32[64,9], index: 1, kind: input, shape index: {}]
  %s2 = inlined_call_operand.vmem [shape: f32[64,1], index: 2, kind: input, shape index: {}]
  %s3 = inlined_call_operand.vmem [shape: f32[64,64], index: 3, kind: input, shape index: {}]
  %s4 = inlined_call_operand.vmem [shape: f32[64,1], index: 4, kind: input, shape index: {}]
  %s5 = inlined_call_operand.vmem [shape: f32[1,64], index: 5, kind: input, shape index: {}]
  %s6 = inlined_call_operand.<no memory space> [shape: f32[1,1], index: 6, kind: input, shape index: {}]
  %s7 = inlined_call_operand.hbm [shape: f32[1,128], index: 7, kind: output, shape index: {}]
  %s8 = sld [smem:[#allocation0]]
  $region38: #{tpu_custom_call.1} parent=0
    _
  %s10 = ssub.s32 1, %s8
  %s11 = scalar_select 0, %s10, %s8
  %v12 = vstv %s6
  %13 = vst [vmem:[#allocation2] sm:$0x1] %v12
  $region1: #{tpu_custom_call.1} parent=0
    #allocation3 [shape = 'u8[512]{0}', space=vmem, size = 0x400, scoped, tag = 'output window, operand 0, single buffered']
    #allocation4 [shape = 's32[1]{0}', space=sflag, size = 0x4, scoped, tag = 'scoped memory for tpu_custom_call.1']
    %14 = vsyncpa [#allocation4], 0
    // Predicated region
    $region2: #{tpu_custom_call.1} parent=1 // pred_check
      _
    $region3: #{tpu_custom_call.1} parent=1 // pred_check_branch
      %16 = sbr.rel (0) target = $region5
    $region4: #{tpu_custom_call.1} parent=1 // pred_region
      _
    $region5: #{tpu_custom_call.1} parent=1 // pred_fallthru
      _
    // Predicated region
    $region6: #{tpu_custom_call.1} parent=1 // pred_check
      _
    $region7: #{tpu_custom_call.1} parent=1 // pred_check_branch
      %18 = sbr.rel (0) target = $region9
    $region8: #{tpu_custom_call.1} parent=1 // pred_region
      _
    $region9: #{tpu_custom_call.1} parent=1 // pred_fallthru
      _
    // Predicated region
    $region10: #{tpu_custom_call.1} parent=1 // pred_check
      _
    $region11: #{tpu_custom_call.1} parent=1 // pred_check_branch
      %20 = sbr.rel (0) target = $region13
    $region12: #{tpu_custom_call.1} parent=1 // pred_region
      _
    $region13: #{tpu_custom_call.1} parent=1 // pred_fallthru
      _
    // Predicated region
    $region14: #{tpu_custom_call.1} parent=1 // pred_check
      _
    $region15: #{tpu_custom_call.1} parent=1 // pred_check_branch
      %22 = sbr.rel (0) target = $region17
    $region16: #{tpu_custom_call.1} parent=1 // pred_region
      _
    $region17: #{tpu_custom_call.1} parent=1 // pred_fallthru
      _
    // Predicated region
    $region18: #{tpu_custom_call.1} parent=1 // pred_check
      _
    $region19: #{tpu_custom_call.1} parent=1 // pred_check_branch
      %24 = sbr.rel (0) target = $region21
    $region20: #{tpu_custom_call.1} parent=1 // pred_region
      _
    $region21: #{tpu_custom_call.1} parent=1 // pred_fallthru
      _
    // Predicated region
    $region22: #{tpu_custom_call.1} parent=1 // pred_check
      _
    $region23: #{tpu_custom_call.1} parent=1 // pred_check_branch
      %26 = sbr.rel (0) target = $region25
    $region24: #{tpu_custom_call.1} parent=1 // pred_region
      _
    $region25: #{tpu_custom_call.1} parent=1 // pred_fallthru
      _
    // Predicated region
    $region26: #{tpu_custom_call.1} parent=1 // pred_check
      _
    $region27: #{tpu_custom_call.1} parent=1 // pred_check_branch
      %28 = sbr.rel (0) target = $region29
    $region28: #{tpu_custom_call.1} parent=1 // pred_region
      _
    $region29: #{tpu_custom_call.1} parent=1 // pred_fallthru
      _
    %v29 = vld [vmem:[%s0] sm:$0xff]
    %v30 = vld [vmem:[%s0 + $0x8] sm:$0x1]
    %v31 = vld [vmem:[%s1] sm:$0xff]
    %v32 = vld [vmem:[%s1 + $0x8] sm:$0xff]
    %v33 = vld [vmem:[%s1 + $0x10] sm:$0xff]
    %v34 = vld [vmem:[%s1 + $0x18] sm:$0xff]
    %v35 = vld [vmem:[%s1 + $0x20] sm:$0xff]
    %v36 = vld [vmem:[%s1 + $0x28] sm:$0xff]
    %v37 = vld [vmem:[%s1 + $0x30] sm:$0xff]
    %v38 = vld [vmem:[%s1 + $0x38] sm:$0xff]
    %v39 = vld [vmem:[%s2] sm:$0xff]
    %v40 = vld [vmem:[%s2 + $0x8] sm:$0xff]
    %v41 = vld [vmem:[%s2 + $0x10] sm:$0xff]
    %v42 = vld [vmem:[%s2 + $0x18] sm:$0xff]
    %v43 = vld [vmem:[%s2 + $0x20] sm:$0xff]
    %v44 = vld [vmem:[%s2 + $0x28] sm:$0xff]
    %v45 = vld [vmem:[%s2 + $0x30] sm:$0xff]
    %v46 = vld [vmem:[%s2 + $0x38] sm:$0xff]
    %48 = vset.pattern.permute.xlu0 0
    %49 = vperm.xlu0 %48, %v39
    %v50 = vpop.permute.xlu0 %49
    %53 = vset.pattern.permute.xlu0 0
    %54 = vperm.xlu0 %53, %v40
    %v55 = vpop.permute.xlu0 %54
    %58 = vset.pattern.permute.xlu0 0
    %59 = vperm.xlu0 %58, %v41
    %v60 = vpop.permute.xlu0 %59
    %63 = vset.pattern.permute.xlu0 0
    %64 = vperm.xlu0 %63, %v42
    %v65 = vpop.permute.xlu0 %64
    %68 = vset.pattern.permute.xlu0 0
    %69 = vperm.xlu0 %68, %v43
    %v70 = vpop.permute.xlu0 %69
    %73 = vset.pattern.permute.xlu0 0
    %74 = vperm.xlu0 %73, %v44
    %v75 = vpop.permute.xlu0 %74
    %78 = vset.pattern.permute.xlu0 0
    %79 = vperm.xlu0 %78, %v45
    %v80 = vpop.permute.xlu0 %79
    %83 = vset.pattern.permute.xlu0 0
    %84 = vperm.xlu0 %83, %v46
    %v85 = vpop.permute.xlu0 %84
    %vm87 = vcmask 72704
    %v89 = vsel %vm87, %v31, 0
    %v92 = vsel %vm87, %v32, 0
    %v95 = vsel %vm87, %v33, 0
    %v98 = vsel %vm87, %v34, 0
    %v101 = vsel %vm87, %v35, 0
    %v104 = vsel %vm87, %v36, 0
    %v107 = vsel %vm87, %v37, 0
    %v110 = vsel %vm87, %v38, 0
    %vm112 = vcmask 1040384
    %v114 = vsel %vm112, %v30, 0
    %116 = vmatprep.subr.mxu0 0.0
    %117 = vmatpush1.msra.mxu0 0.0
    %118 = vmatprep.subr.mxu0 0.0
    %119 = vmatpush1.msra.mxu0 0.0
    %120 = vmatprep.subr.mxu0 0.0
    %121 = vmatpush1.msra.mxu0 0.0
    %122 = vmatprep.subr.mxu0 0.0
    %123 = vmatpush1.msra.mxu0 0.0
    %124 = vmatprep.subr.mxu0 0.0
    %125 = vmatpush1.msra.mxu0 0.0
    %126 = vmatprep.subr.mxu0 0.0
    %127 = vmatpush1.msra.mxu0 0.0
    %128 = vmatprep.subr.mxu0 0.0
    %129 = vmatpush1.msra.mxu0 0.0
    %130 = vmatprep.subr.mxu0 0.0
    %131 = vmatpush1.msra.mxu0 0.0
    %132 = vmatprep.subr.mxu0 0.0
    %133 = vmatpush1.msra.mxu0 0.0
    %134 = vmatprep.subr.mxu0 0.0
    %135 = vmatpush1.msra.mxu0 0.0
    %136 = vmatprep.subr.mxu0 0.0
    %137 = vmatpush1.msra.mxu0 0.0
    %138 = vmatprep.subr.mxu0 0.0
    %139 = vmatpush1.msra.mxu0 0.0
    %140 = vmatprep.subr.mxu0 0.0
    %141 = vmatpush1.msra.mxu0 0.0
    %142 = vmatprep.subr.mxu0 0.0
    %143 = vmatpush1.msra.mxu0 0.0
    %144 = vmatprep.subr.mxu0 0.0
    %145 = vmatpush1.msra.mxu0 %v114
    %146 = vmatprep.subr.mxu0 0.0
    %147 = vmatpush1.msra.mxu0 %v29
    %148 = vmatprep.subr.mxu0 0.0
    %149 = vmatpush2.msra.mxu0 0.0
    %150 = vmatprep.subr.mxu0 0.0
    %151 = vmatpush2.msra.mxu0 0.0
    %152 = vmatprep.subr.mxu0 0.0
    %153 = vmatpush2.msra.mxu0 0.0
    %154 = vmatprep.subr.mxu0 0.0
    %155 = vmatpush2.msra.mxu0 0.0
    %156 = vmatprep.subr.mxu0 0.0
    %157 = vmatpush2.msra.mxu0 0.0
    %158 = vmatprep.subr.mxu0 0.0
    %159 = vmatpush2.msra.mxu0 0.0
    %160 = vmatprep.subr.mxu0 0.0
    %161 = vmatpush2.msra.mxu0 0.0
    %162 = vmatprep.subr.mxu0 0.0
    %163 = vmatpush2.msra.mxu0 0.0
    %164 = vmatprep.subr.mxu0 0.0
    %165 = vmatpush2.msra.mxu0 0.0
    %166 = vmatprep.subr.mxu0 0.0
    %167 = vmatpush2.msra.mxu0 0.0
    %168 = vmatprep.subr.mxu0 0.0
    %169 = vmatpush2.msra.mxu0 0.0
    %170 = vmatprep.subr.mxu0 0.0
    %171 = vmatpush2.msra.mxu0 0.0
    %172 = vmatprep.subr.mxu0 0.0
    %173 = vmatpush2.msra.mxu0 0.0
    %174 = vmatprep.subr.mxu0 0.0
    %175 = vmatpush2.msra.mxu0 0.0
    %176 = vmatprep.subr.mxu0 0.0
    %177 = vmatpush2.msra.mxu0 0.0
    %178 = vmatprep.subr.mxu0 0.0
    %179 = vmatpush2.msra.mxu0 0.0
    %180 = vmatprep.mubr.f32.mxu0 0.0
    %181 = vmatmul.mubr.f32.gmra.mxu0 %v89
    %v182 = vpop.f32.mrf.mxu0
    %v183 = vadd.f32 %v50, %v182
    %v184 = vpop.f32.mrf.mxu0
    %185 = vmatprep.mubr.f32.mxu0 0.0
    %186 = vmatmul.mubr.f32.gmra.mxu0 %v92
    %v187 = vpop.f32.mrf.mxu0
    %v188 = vadd.f32 %v55, %v187
    %v189 = vpop.f32.mrf.mxu0
    %190 = vmatprep.mubr.f32.mxu0 0.0
    %191 = vmatmul.mubr.f32.gmra.mxu0 %v95
    %v192 = vpop.f32.mrf.mxu0
    %v193 = vadd.f32 %v60, %v192
    %v194 = vpop.f32.mrf.mxu0
    %195 = vmatprep.mubr.f32.mxu0 0.0
    %196 = vmatmul.mubr.f32.gmra.mxu0 %v98
    %v197 = vpop.f32.mrf.mxu0
    %v198 = vadd.f32 %v65, %v197
    %v199 = vpop.f32.mrf.mxu0
    %200 = vmatprep.mubr.f32.mxu0 0.0
    %201 = vmatmul.mubr.f32.gmra.mxu0 %v101
    %v202 = vpop.f32.mrf.mxu0
    %v203 = vadd.f32 %v70, %v202
    %v204 = vpop.f32.mrf.mxu0
    %205 = vmatprep.mubr.f32.mxu0 0.0
    %206 = vmatmul.mubr.f32.gmra.mxu0 %v104
    %v207 = vpop.f32.mrf.mxu0
    %v208 = vadd.f32 %v75, %v207
    %v209 = vpop.f32.mrf.mxu0
    %210 = vmatprep.mubr.f32.mxu0 0.0
    %211 = vmatmul.mubr.f32.gmra.mxu0 %v107
    %v212 = vpop.f32.mrf.mxu0
    %v213 = vadd.f32 %v80, %v212
    %v214 = vpop.f32.mrf.mxu0
    %215 = vmatprep.mubr.f32.mxu0 0.0
    %216 = vmatmul.mubr.f32.gmra.mxu0 %v110
    %v217 = vpop.f32.mrf.mxu0
    %v218 = vadd.f32 %v85, %v217
    %v219 = vpop.f32.mrf.mxu0
    %220 = vdwg.mxu0
    %v221 = vmax.f32 %v183, 0.0
    %v222 = vmax.f32 %v188, 0.0
    %v223 = vmax.f32 %v193, 0.0
    %v224 = vmax.f32 %v198, 0.0
    %v225 = vmax.f32 %v203, 0.0
    %v226 = vmax.f32 %v208, 0.0
    %v227 = vmax.f32 %v213, 0.0
    %v228 = vmax.f32 %v218, 0.0
    %v229 = vld [vmem:[%s3] sm:$0xff]
    %v230 = vld [vmem:[%s3 + $0x8] sm:$0xff]
    %v231 = vld [vmem:[%s3 + $0x10] sm:$0xff]
    %v232 = vld [vmem:[%s3 + $0x18] sm:$0xff]
    %v233 = vld [vmem:[%s3 + $0x20] sm:$0xff]
    %v234 = vld [vmem:[%s3 + $0x28] sm:$0xff]
    %v235 = vld [vmem:[%s3 + $0x30] sm:$0xff]
    %v236 = vld [vmem:[%s3 + $0x38] sm:$0xff]
    %v237 = vld [vmem:[%s4] sm:$0xff]
    %v238 = vld [vmem:[%s4 + $0x8] sm:$0xff]
    %v239 = vld [vmem:[%s4 + $0x10] sm:$0xff]
    %v240 = vld [vmem:[%s4 + $0x18] sm:$0xff]
    %v241 = vld [vmem:[%s4 + $0x20] sm:$0xff]
    %v242 = vld [vmem:[%s4 + $0x28] sm:$0xff]
    %v243 = vld [vmem:[%s4 + $0x30] sm:$0xff]
    %v244 = vld [vmem:[%s4 + $0x38] sm:$0xff]
    %246 = vset.pattern.permute.xlu0 0
    %247 = vperm.xlu0 %246, %v237
    %v248 = vpop.permute.xlu0 %247
    %251 = vset.pattern.permute.xlu0 0
    %252 = vperm.xlu0 %251, %v238
    %v253 = vpop.permute.xlu0 %252
    %256 = vset.pattern.permute.xlu0 0
    %257 = vperm.xlu0 %256, %v239
    %v258 = vpop.permute.xlu0 %257
    %261 = vset.pattern.permute.xlu0 0
    %262 = vperm.xlu0 %261, %v240
    %v263 = vpop.permute.xlu0 %262
    %266 = vset.pattern.permute.xlu0 0
    %267 = vperm.xlu0 %266, %v241
    %v268 = vpop.permute.xlu0 %267
    %271 = vset.pattern.permute.xlu0 0
    %272 = vperm.xlu0 %271, %v242
    %v273 = vpop.permute.xlu0 %272
    %276 = vset.pattern.permute.xlu0 0
    %277 = vperm.xlu0 %276, %v243
    %v278 = vpop.permute.xlu0 %277
    %281 = vset.pattern.permute.xlu0 0
    %282 = vperm.xlu0 %281, %v244
    %v283 = vpop.permute.xlu0 %282
    %vm285 = vcmask 523264
    %v287 = vsel %vm285, %v229, 0
    %v290 = vsel %vm285, %v230, 0
    %v293 = vsel %vm285, %v231, 0
    %v296 = vsel %vm285, %v232, 0
    %v299 = vsel %vm285, %v233, 0
    %v302 = vsel %vm285, %v234, 0
    %v305 = vsel %vm285, %v235, 0
    %v308 = vsel %vm285, %v236, 0
    %310 = vmatprep.subr.mxu0 0.0
    %311 = vmatpush1.msra.mxu0 0.0
    %312 = vmatprep.subr.mxu0 0.0
    %313 = vmatpush1.msra.mxu0 0.0
    %314 = vmatprep.subr.mxu0 0.0
    %315 = vmatpush1.msra.mxu0 0.0
    %316 = vmatprep.subr.mxu0 0.0
    %317 = vmatpush1.msra.mxu0 0.0
    %318 = vmatprep.subr.mxu0 0.0
    %319 = vmatpush1.msra.mxu0 0.0
    %320 = vmatprep.subr.mxu0 0.0
    %321 = vmatpush1.msra.mxu0 0.0
    %322 = vmatprep.subr.mxu0 0.0
    %323 = vmatpush1.msra.mxu0 0.0
    %324 = vmatprep.subr.mxu0 0.0
    %325 = vmatpush1.msra.mxu0 0.0
    %326 = vmatprep.subr.mxu0 0.0
    %327 = vmatpush1.msra.mxu0 %v228
    %328 = vmatprep.subr.mxu0 0.0
    %329 = vmatpush1.msra.mxu0 %v227
    %330 = vmatprep.subr.mxu0 0.0
    %331 = vmatpush1.msra.mxu0 %v226
    %332 = vmatprep.subr.mxu0 0.0
    %333 = vmatpush1.msra.mxu0 %v225
    %334 = vmatprep.subr.mxu0 0.0
    %335 = vmatpush1.msra.mxu0 %v224
    %336 = vmatprep.subr.mxu0 0.0
    %337 = vmatpush1.msra.mxu0 %v223
    %338 = vmatprep.subr.mxu0 0.0
    %339 = vmatpush1.msra.mxu0 %v222
    %340 = vmatprep.subr.mxu0 0.0
    %341 = vmatpush1.msra.mxu0 %v221
    %342 = vmatprep.subr.mxu0 0.0
    %343 = vmatpush2.msra.mxu0 0.0
    %344 = vmatprep.subr.mxu0 0.0
    %345 = vmatpush2.msra.mxu0 0.0
    %346 = vmatprep.subr.mxu0 0.0
    %347 = vmatpush2.msra.mxu0 0.0
    %348 = vmatprep.subr.mxu0 0.0
    %349 = vmatpush2.msra.mxu0 0.0
    %350 = vmatprep.subr.mxu0 0.0
    %351 = vmatpush2.msra.mxu0 0.0
    %352 = vmatprep.subr.mxu0 0.0
    %353 = vmatpush2.msra.mxu0 0.0
    %354 = vmatprep.subr.mxu0 0.0
    %355 = vmatpush2.msra.mxu0 0.0
    %356 = vmatprep.subr.mxu0 0.0
    %357 = vmatpush2.msra.mxu0 0.0
    %358 = vmatprep.subr.mxu0 0.0
    %359 = vmatpush2.msra.mxu0 0.0
    %360 = vmatprep.subr.mxu0 0.0
    %361 = vmatpush2.msra.mxu0 0.0
    %362 = vmatprep.subr.mxu0 0.0
    %363 = vmatpush2.msra.mxu0 0.0
    %364 = vmatprep.subr.mxu0 0.0
    %365 = vmatpush2.msra.mxu0 0.0
    %366 = vmatprep.subr.mxu0 0.0
    %367 = vmatpush2.msra.mxu0 0.0
    %368 = vmatprep.subr.mxu0 0.0
    %369 = vmatpush2.msra.mxu0 0.0
    %370 = vmatprep.subr.mxu0 0.0
    %371 = vmatpush2.msra.mxu0 0.0
    %372 = vmatprep.subr.mxu0 0.0
    %373 = vmatpush2.msra.mxu0 0.0
    %374 = vmatprep.mubr.f32.mxu0 0.0
    %375 = vmatmul.mubr.f32.gmra.mxu0 %v287
    %v376 = vpop.f32.mrf.mxu0
    %v377 = vadd.f32 %v248, %v376
    %v378 = vpop.f32.mrf.mxu0
    %379 = vmatprep.mubr.f32.mxu0 0.0
    %380 = vmatmul.mubr.f32.gmra.mxu0 %v290
    %v381 = vpop.f32.mrf.mxu0
    %v382 = vadd.f32 %v253, %v381
    %v383 = vpop.f32.mrf.mxu0
    %384 = vmatprep.mubr.f32.mxu0 0.0
    %385 = vmatmul.mubr.f32.gmra.mxu0 %v293
    %v386 = vpop.f32.mrf.mxu0
    %v387 = vadd.f32 %v258, %v386
    %v388 = vpop.f32.mrf.mxu0
    %389 = vmatprep.mubr.f32.mxu0 0.0
    %390 = vmatmul.mubr.f32.gmra.mxu0 %v296
    %v391 = vpop.f32.mrf.mxu0
    %v392 = vadd.f32 %v263, %v391
    %v393 = vpop.f32.mrf.mxu0
    %394 = vmatprep.mubr.f32.mxu0 0.0
    %395 = vmatmul.mubr.f32.gmra.mxu0 %v299
    %v396 = vpop.f32.mrf.mxu0
    %v397 = vadd.f32 %v268, %v396
    %v398 = vpop.f32.mrf.mxu0
    %399 = vmatprep.mubr.f32.mxu0 0.0
    %400 = vmatmul.mubr.f32.gmra.mxu0 %v302
    %v401 = vpop.f32.mrf.mxu0
    %v402 = vadd.f32 %v273, %v401
    %v403 = vpop.f32.mrf.mxu0
    %404 = vmatprep.mubr.f32.mxu0 0.0
    %405 = vmatmul.mubr.f32.gmra.mxu0 %v305
    %v406 = vpop.f32.mrf.mxu0
    %v407 = vadd.f32 %v278, %v406
    %v408 = vpop.f32.mrf.mxu0
    %409 = vmatprep.mubr.f32.mxu0 0.0
    %410 = vmatmul.mubr.f32.gmra.mxu0 %v308
    %v411 = vpop.f32.mrf.mxu0
    %v412 = vadd.f32 %v283, %v411
    %v413 = vpop.f32.mrf.mxu0
    %414 = vdwg.mxu0
    %v415 = vmax.f32 %v377, 0.0
    %v416 = vmax.f32 %v382, 0.0
    %v417 = vmax.f32 %v387, 0.0
    %v418 = vmax.f32 %v392, 0.0
    %v419 = vmax.f32 %v397, 0.0
    %v420 = vmax.f32 %v402, 0.0
    %v421 = vmax.f32 %v407, 0.0
    %v422 = vmax.f32 %v412, 0.0
    %v423 = vld [vmem:[%s5] sm:$0x1]
    %v424 = vld [vmem:[#allocation2] sm:$0x1]
    %426 = vset.pattern.permute.xlu0 0
    %427 = vperm.xlu0 %426, %v424
    %v428 = vpop.permute.xlu0 %427
    %v430 = vlaneseq
    %v431 = vshrl.u32 %v430, 7
    %v432 = vsub.s32 0, %v431
    %v433 = vrot.slane %v428, %v432
    %v435 = vsel %vm285, %v423, 0
    %437 = vmatprep.subr.mxu0 0.0
    %438 = vmatpush1.msra.mxu0 0.0
    %439 = vmatprep.subr.mxu0 0.0
    %440 = vmatpush1.msra.mxu0 0.0
    %441 = vmatprep.subr.mxu0 0.0
    %442 = vmatpush1.msra.mxu0 0.0
    %443 = vmatprep.subr.mxu0 0.0
    %444 = vmatpush1.msra.mxu0 0.0
    %445 = vmatprep.subr.mxu0 0.0
    %446 = vmatpush1.msra.mxu0 0.0
    %447 = vmatprep.subr.mxu0 0.0
    %448 = vmatpush1.msra.mxu0 0.0
    %449 = vmatprep.subr.mxu0 0.0
    %450 = vmatpush1.msra.mxu0 0.0
    %451 = vmatprep.subr.mxu0 0.0
    %452 = vmatpush1.msra.mxu0 0.0
    %453 = vmatprep.subr.mxu0 0.0
    %454 = vmatpush1.msra.mxu0 %v422
    %455 = vmatprep.subr.mxu0 0.0
    %456 = vmatpush1.msra.mxu0 %v421
    %457 = vmatprep.subr.mxu0 0.0
    %458 = vmatpush1.msra.mxu0 %v420
    %459 = vmatprep.subr.mxu0 0.0
    %460 = vmatpush1.msra.mxu0 %v419
    %461 = vmatprep.subr.mxu0 0.0
    %462 = vmatpush1.msra.mxu0 %v418
    %463 = vmatprep.subr.mxu0 0.0
    %464 = vmatpush1.msra.mxu0 %v417
    %465 = vmatprep.subr.mxu0 0.0
    %466 = vmatpush1.msra.mxu0 %v416
    %467 = vmatprep.subr.mxu0 0.0
    %468 = vmatpush1.msra.mxu0 %v415
    %469 = vmatprep.subr.mxu0 0.0
    %470 = vmatpush2.msra.mxu0 0.0
    %471 = vmatprep.subr.mxu0 0.0
    %472 = vmatpush2.msra.mxu0 0.0
    %473 = vmatprep.subr.mxu0 0.0
    %474 = vmatpush2.msra.mxu0 0.0
    %475 = vmatprep.subr.mxu0 0.0
    %476 = vmatpush2.msra.mxu0 0.0
    %477 = vmatprep.subr.mxu0 0.0
    %478 = vmatpush2.msra.mxu0 0.0
    %479 = vmatprep.subr.mxu0 0.0
    %480 = vmatpush2.msra.mxu0 0.0
    %481 = vmatprep.subr.mxu0 0.0
    %482 = vmatpush2.msra.mxu0 0.0
    %483 = vmatprep.subr.mxu0 0.0
    %484 = vmatpush2.msra.mxu0 0.0
    %485 = vmatprep.subr.mxu0 0.0
    %486 = vmatpush2.msra.mxu0 0.0
    %487 = vmatprep.subr.mxu0 0.0
    %488 = vmatpush2.msra.mxu0 0.0
    %489 = vmatprep.subr.mxu0 0.0
    %490 = vmatpush2.msra.mxu0 0.0
    %491 = vmatprep.subr.mxu0 0.0
    %492 = vmatpush2.msra.mxu0 0.0
    %493 = vmatprep.subr.mxu0 0.0
    %494 = vmatpush2.msra.mxu0 0.0
    %495 = vmatprep.subr.mxu0 0.0
    %496 = vmatpush2.msra.mxu0 0.0
    %497 = vmatprep.subr.mxu0 0.0
    %498 = vmatpush2.msra.mxu0 0.0
    %499 = vmatprep.subr.mxu0 0.0
    %500 = vmatpush2.msra.mxu0 0.0
    %501 = vmatprep.mubr.f32.mxu0 0.0
    %502 = vmatmul.mubr.f32.gmra.mxu0 %v435
    %v503 = vpop.f32.mrf.mxu0
    %v504 = vadd.f32 %v433, %v503
    %v505 = vpop.f32.mrf.mxu0
    %506 = vdwg.mxu0
    %v507 = vxor.u32 %v504, 2147483648
    %v508 = vmul.f32 %v507, 1.442695
    %v509 = vpow.pop %v508
    %v510 = vadd.f32 %v509, 1.0
    %v511 = vrcp.pop %v510
    %v512 = vmul.f32 1.0, %v511
    %513 = vst [vmem:[#allocation3] sm:$0x1] %v512
    // Predicated region
    $region30: #{tpu_custom_call.1} parent=1 // pred_check
      _
    $region31: #{tpu_custom_call.1} parent=1 // pred_check_branch
      %515 = sbr.rel (0) target = $region33
    $region32: #{tpu_custom_call.1} parent=1 // pred_region
      %s517 = ssub.s32 16, 16
      %518 = vsyncadd [#allocation4], %s517
      %s520 = sshll.u32 [#allocation3], 4
      %s521 = int_to_ptr.vmem [resolvable:$true] %s520
      %523 = dma.vmem_to_hbm [thread:$0]  %s521, 16, %s7, [#allocation4]
    $region33: #{tpu_custom_call.1} parent=1 // pred_fallthru
      _
    // Predicated region
    $region34: #{tpu_custom_call.1} parent=1 // pred_check
      _
    $region35: #{tpu_custom_call.1} parent=1 // pred_check_branch
      %525 = sbr.rel (0) target = $region37
    $region36: #{tpu_custom_call.1} parent=1 // pred_region
      %526 = dma.done [#allocation4], 16
    $region37: #{tpu_custom_call.1} parent=1 // pred_fallthru
      _
    %527 = vsyncpa [#allocation4], 1

</llo_original>
